<compile_context>
chip_gen: v6e
topology: v6e:2x2x1
jax: 0.10.0
libtpu: 0.0.40
codegen_flags: <defaults>
</compile_context>

<pallas_src>
import functools

import numpy as np
import jax
import jax.numpy as jnp
from jax import lax
from jax.experimental import pallas as pl
from jax.experimental.pallas import tpu as pltpu


# ----------------------------------------------------------------------------
# Layout helpers
# ----------------------------------------------------------------------------
def _round_up(x, m):
    return (x + m - 1) // m * m


def _padded_flat_len(H, W):
    """Length of one flattened zero-padded image and its lane-padded size."""
    L = (H + 2) * (W + 2)
    Lp = _round_up(L, 128)
    # The separable 5x5 maxpool over-reaches the flat image by up to W+3
    # lanes; that over-reach must land in the image's own zero tail.
    if Lp - L < W + 3:
        Lp += 128
    return L, Lp


@functools.lru_cache(maxsize=None)
def _roll_sign():
    """pltpu.roll is expected to match jnp.roll; probe once to be robust."""
    def k(x_ref, o_ref):
        o_ref[...] = pltpu.roll(x_ref[...], 3, axis=1)

    x = jnp.arange(8 * 256, dtype=jnp.float32).reshape(8, 256)
    y = pl.pallas_call(k, out_shape=jax.ShapeDtypeStruct((8, 256), jnp.float32))(x)
    if bool(jnp.array_equal(y, jnp.roll(x, 3, axis=1))):
        return 1
    if bool(jnp.array_equal(y, jnp.roll(x, -3, axis=1))):
        return -1
    raise AssertionError("unexpected pltpu.roll semantics")


def _num_tensorcores():
    """1 TC on v5e/v6e, 2 TCs on v7x (heuristic on device_kind)."""
    try:
        kind = jax.devices()[0].device_kind.lower()
    except Exception:
        return 1
    return 2 if ("v7" in kind or "7x" in kind) else 1


def _pick_block_n(N, num_cores):
    """Images packed side-by-side on lanes per grid step."""
    if num_cores <= 1:
        # Single TensorCore: extra grid steps are pure overhead -> one big
        # step for small N (cap to bound VMEM / vreg pressure).
        cap, nb = 16, 1
        for d in range(1, N + 1):
            if N % d == 0 and d <= cap:
                nb = d
        return nb
    # Two TensorCores (v7x): prefer an EVEN number of equal-size grid steps
    # so megacore sharding keeps both cores busy.
    cap, best = 8, 0
    for d in range(1, N + 1):
        if N % d == 0 and d <= cap and (N // d) % 2 == 0:
            best = d
    if best == 0:
        best = 1
        for d in range(1, N + 1):
            if N % d == 0 and d <= cap:
                best = d
    return best


# ----------------------------------------------------------------------------
# In-kernel ops (closures over static W, lane count, roll sign)
# ----------------------------------------------------------------------------
def _make_ops(W, n_lanes, roll_sign):
    Wp = W + 2

    def shift(x, d):
        # y[:, j] = x[:, (j + d) mod n_lanes]  (lane rotation, XLU slot).
        if d == 0:
            return x
        amt = (-d * roll_sign) % n_lanes
        return pltpu.roll(x, amt, axis=1)

    def conv3x3(x, w_taps, mask_b):
        # w_taps: (3, rows_out, 3*rows_in) tap-fused weights; x: (rows_in, L)
        # with zero border / tail.  Three matmuls (one per ky), K = 3*rows_in.
        xcat = jnp.concatenate([shift(x, -1), x, shift(x, 1)], axis=0)
        out = None
        for ky in range(3):
            row = jnp.dot(w_taps[ky], xcat, preferred_element_type=jnp.float32)
            row = shift(row, (ky - 1) * Wp)
            out = row if out is None else out + row
        return out * mask_b                       # re-establish zero border

    def maxpool5(x, mask_b):
        # Separable 5x5 / stride-1 max.  x >= 0 with a zero border, so the
        # zero padding is equivalent to PyTorch MaxPool2d's -inf padding.
        h = x
        for dx in (-2, -1, 1, 2):
            h = jnp.maximum(h, shift(x, dx))
        out = h
        for dy in (-2, -1, 1, 2):
            out = jnp.maximum(out, shift(h, dy * Wp))
        return out * mask_b

    return conv3x3, maxpool5


# ----------------------------------------------------------------------------
# Kernels
# ----------------------------------------------------------------------------
def mmf_fused_kernel(mask_ref, x2_ref, w1_ref, b1_ref, w2345_ref, w6_ref, w7_ref,
                     o_ref, *, C, W, roll_sign):
    n_lanes = x2_ref.shape[1]
    conv3x3, maxpool5 = _make_ops(W, n_lanes, roll_sign)
    relu = lambda t: jnp.maximum(t, 0.0)

    # Hoisted border-mask broadcasts (done once; JAX does not CSE these).
    m = mask_ref[...]
    mask2 = jnp.broadcast_to(m, (2 * C, n_lanes))
    mask1 = jnp.broadcast_to(m, (C, n_lanes))

    # dropout_rgb / dropout_d -> identity (eval mode).
    # conv1 (1x1) on both streams at once: block-diagonal weight + bias.
    out2 = (jnp.dot(w1_ref[...], x2_ref[...], preferred_element_type=jnp.float32)
            + b1_ref[...]) * mask2

    # Two residual blocks, both streams at once (block-diagonal 3x3 weights).
    for blk in range(2):
        t = conv3x3(relu(out2), w2345_ref[2 * blk], mask2)
        t = conv3x3(relu(t), w2345_ref[2 * blk + 1], mask2)
        out2 = out2 + t

    # relu(conv6_rgb(out) + conv6_d(out_d)) as one merged (C, 6C) conv.
    out = relu(conv3x3(out2, w6_ref[...], mask1))
    # out + conv7_rgb(maxpool5(out))
    out = out + conv3x3(maxpool5(out, mask1), w7_ref[...], mask1)
    o_ref[...] = out.astype(o_ref.dtype)


def mmf_rgb_kernel(mask_ref, x_ref, w1_ref, b1_ref, w3_ref, o_ref,
                   *, C, W, roll_sign):
    n_lanes = x_ref.shape[1]
    conv3x3, maxpool5 = _make_ops(W, n_lanes, roll_sign)
    relu = lambda t: jnp.maximum(t, 0.0)
    mask1 = jnp.broadcast_to(mask_ref[...], (C, n_lanes))

    # dropout_rgb -> identity (eval mode).
    out = (jnp.dot(w1_ref[...], x_ref[...], preferred_element_type=jnp.float32)
           + b1_ref[...]) * mask1
    for blk in range(2):                       # w3_ref[0..3] = conv2..conv5
        t = conv3x3(relu(out), w3_ref[2 * blk], mask1)
        t = conv3x3(relu(t), w3_ref[2 * blk + 1], mask1)
        out = out + t
    out = relu(conv3x3(out, w3_ref[4], mask1))              # conv6
    out = out + conv3x3(maxpool5(out, mask1), w3_ref[5], mask1)   # conv7
    o_ref[...] = out.astype(o_ref.dtype)


# ----------------------------------------------------------------------------
# Wrapper: layout plumbing + weight tap/stream fusion (host side)
# ----------------------------------------------------------------------------
def _to_flat(x, Lp):
    # (N, C, H, W) -> (C, N*Lp) padded-flat, zero border / zero tail.
    N, C, H, W = x.shape
    xp = jnp.pad(x, ((0, 0), (0, 0), (1, 1), (1, 1)))
    xf = xp.reshape(N, C, (H + 2) * (W + 2))
    xf = jnp.pad(xf, ((0, 0), (0, 0), (0, Lp - (H + 2) * (W + 2))))
    return jnp.transpose(xf, (1, 0, 2)).reshape(C, N * Lp).astype(jnp.float32)


def _from_flat(y, N, C, H, W, Lp):
    y = y.reshape(C, N, Lp).transpose(1, 0, 2)[:, :, :(H + 2) * (W + 2)]
    y = y.reshape(N, C, H + 2, W + 2)
    return y[:, :, 1:H + 1, 1:W + 1]


def _interior_mask(H, W, Lp, n_imgs):
    Wp = W + 2
    m2 = np.zeros((H + 2, Wp), np.float32)
    m2[1:H + 1, 1:W + 1] = 1.0
    m = np.zeros((Lp,), np.float32)
    m[:(H + 2) * Wp] = m2.reshape(-1)
    return jnp.asarray(np.tile(m, n_imgs)[None, :])


def _t33(w):
    # HWIO (3,3,Cin,Cout) -> (3,3,Cout,Cin)
    return jnp.transpose(w, (0, 1, 3, 2)).astype(jnp.float32)


def _fuse_single(w):
    # -> (3, Cout, 3*Cin): per ky, [w(kx=0) | w(kx=1) | w(kx=2)].
    wt = _t33(w)
    return jnp.concatenate([wt[:, 0], wt[:, 1], wt[:, 2]], axis=-1)


def _fuse_dual_blockdiag(wr, wd):
    # -> (3, 2C, 6C); column blocks match xcat rows [rgb(-1), d(-1), rgb(0),
    # d(0), rgb(+1), d(+1)]; block-diagonal over the two streams.
    wrt, wdt = _t33(wr), _t33(wd)
    C = wrt.shape[2]
    Z = jnp.zeros((3, C, C), jnp.float32)
    top = jnp.concatenate([wrt[:, 0], Z, wrt[:, 1], Z, wrt[:, 2], Z], axis=-1)
    bot = jnp.concatenate([Z, wdt[:, 0], Z, wdt[:, 1], Z, wdt[:, 2]], axis=-1)
    return jnp.concatenate([top, bot], axis=1)


def _fuse_merge(wr, wd):
    # conv6_rgb(rgb) + conv6_d(d) as one (C, 6C) weight per ky.
    wrt, wdt = _t33(wr), _t33(wd)
    return jnp.concatenate([wrt[:, 0], wdt[:, 0], wrt[:, 1], wdt[:, 1],
                            wrt[:, 2], wdt[:, 2]], axis=-1)


def _blockdiag2(a, b):
    C = a.shape[0]
    Z = jnp.zeros((C, C), jnp.float32)
    return jnp.concatenate([jnp.concatenate([a, Z], axis=1),
                            jnp.concatenate([Z, b], axis=1)], axis=0)


def _full_spec(shape):
    nd = len(shape)
    return pl.BlockSpec(shape, lambda i, nd=nd: (0,) * nd)


def mmf_forward(x_rgb, x_d, params, use_depth=None):
    """x_rgb, x_d: (N, C, H, W) float32 (PyTorch NCHW). Returns (N, C, H, W).

    `use_depth` mirrors PyTorch's data-dependent `if torch.sum(x_d) == 0`
    branch.  Pass it explicitly (static bool) when calling under jax.jit; if
    None it is resolved on the host (forces one device sync, like PyTorch).
    """
    N, C, H, W = x_rgb.shape
    _, Lp = _padded_flat_len(H, W)
    if use_depth is None:
        use_depth = bool(jnp.sum(x_d) != 0)

    nb = _pick_block_n(N, _num_tensorcores())
    n_blocks = N // nb
    lanes = nb * Lp
    roll_sign = _roll_sign()

    mask = _interior_mask(H, W, Lp, nb)
    xr = _to_flat(x_rgb, Lp)                      # (C, N*Lp)

    mask_spec = pl.BlockSpec((1, lanes), lambda i: (0, 0))
    out_spec = pl.BlockSpec((C, lanes), lambda i: (0, i))

    if use_depth:
        xd = _to_flat(x_d, Lp)
        x2 = jnp.concatenate([xr, xd], axis=0)    # (2C, N*Lp), streams stacked
        w1 = _blockdiag2(jnp.transpose(params['w1r_t']),
                         jnp.transpose(params['w1d_t']))      # (2C, 2C)
        b1 = jnp.concatenate([params['b1r'].reshape(C, 1),
                              params['b1d'].reshape(C, 1)], axis=0)
        w2345 = jnp.stack([
            _fuse_dual_blockdiag(params['w2r'], params['w2d']),
            _fuse_dual_blockdiag(params['w3r'], params['w3d']),
            _fuse_dual_blockdiag(params['w4r'], params['w4d']),
            _fuse_dual_blockdiag(params['w5r'], params['w5d'])], axis=0)
        w6 = _fuse_merge(params['w6r'], params['w6d'])        # (3, C, 6C)
        w7 = _fuse_single(params['w7r'])                      # (3, C, 3C)

        kern = functools.partial(mmf_fused_kernel, C=C, W=W, roll_sign=roll_sign)
        in_specs = [mask_spec,
                    pl.BlockSpec((2 * C, lanes), lambda i: (0, i)),
                    _full_spec((2 * C, 2 * C)), _full_spec((2 * C, 1)),
                    _full_spec((4, 3, 2 * C, 6 * C)),
                    _full_spec((3, C, 6 * C)), _full_spec((3, C, 3 * C))]
        args = (mask, x2, w1, b1, w2345, w6, w7)
    else:
        w1 = jnp.transpose(params['w1r_t'])
        b1 = params['b1r'].reshape(C, 1)
        w3all = jnp.stack([_fuse_single(params[n]) for n in
                           ('w2r', 'w3r', 'w4r', 'w5r', 'w6r', 'w7r')], axis=0)
        kern = functools.partial(mmf_rgb_kernel, C=C, W=W, roll_sign=roll_sign)
        in_specs = [mask_spec,
                    pl.BlockSpec((C, lanes), lambda i: (0, i)),
                    _full_spec((C, C)), _full_spec((C, 1)),
                    _full_spec((6, 3, C, 3 * C))]
        args = (mask, xr, w1, b1, w3all)

    out_flat = pl.pallas_call(
        kern,
        out_shape=jax.ShapeDtypeStruct((C, N * Lp), jnp.float32),
        grid_spec=pltpu.PrefetchScalarGridSpec(
            num_scalar_prefetch=0,
            grid=(n_blocks,),
            in_specs=in_specs,
            out_specs=out_spec),
        compiler_params=pltpu.CompilerParams(
            dimension_semantics=("parallel",),
            vmem_limit_bytes=48 * 1024 * 1024),
    )(*args)
    return _from_flat(out_flat, N, C, H, W, Lp)


# ----------------------------------------------------------------------------
# Pure-JAX reference (for correctness check; HIGHEST precision matmuls/convs)
# ----------------------------------------------------------------------------
def _ref_forward(x_rgb, x_d, p):
    HI = lax.Precision.HIGHEST
    xr = jnp.transpose(x_rgb, (0, 2, 3, 1)).astype(jnp.float32)
    xd = jnp.transpose(x_d, (0, 2, 3, 1)).astype(jnp.float32)
    relu = lambda t: jnp.maximum(t, 0.0)

    def c1(x, w_t, b):
        return jnp.einsum('nhwc,cd->nhwd', x, w_t, precision=HI) + b

    def c3(x, w):
        return lax.conv_general_dilated(
            x, w, (1, 1), [(1, 1), (1, 1)],
            dimension_numbers=('NHWC', 'HWIO', 'NHWC'), precision=HI)

    def mp5(x):
        return lax.reduce_window(x, -jnp.inf, lax.max,
                                 (1, 5, 5, 1), (1, 1, 1, 1),
                                 [(0, 0), (2, 2), (2, 2), (0, 0)])

    def stream(o, w2, w3, w4, w5):
        t = c3(relu(o), w2); t = c3(relu(t), w3); o = o + t
        t = c3(relu(o), w4); t = c3(relu(t), w5); o = o + t
        return o

    if bool(jnp.sum(x_d) == 0):
        out = c1(xr, p['w1r_t'], p['b1r'])
        out = stream(out, p['w2r'], p['w3r'], p['w4r'], p['w5r'])
        out = relu(c3(out, p['w6r']))
        out = out + c3(mp5(out), p['w7r'])
    else:
        out = c1(xr, p['w1r_t'], p['b1r'])
        out_d = c1(xd, p['w1d_t'], p['b1d'])
        out = stream(out, p['w2r'], p['w3r'], p['w4r'], p['w5r'])
        out_d = stream(out_d, p['w2d'], p['w3d'], p['w4d'], p['w5d'])
        out = relu(c3(out, p['w6r']) + c3(out_d, p['w6d']))
        out = out + c3(mp5(out), p['w7r'])
    return jnp.transpose(out, (0, 3, 1, 2))


# ----------------------------------------------------------------------------
# Deterministic synthetic parameters (reference layouts: 1x1 as (Cin,Cout),
# bias (1,C), 3x3 as HWIO; the wrapper fuses/transposes for the kernel).
# ----------------------------------------------------------------------------
def init_params(key, C):
    ks = jax.random.split(key, 16)
    p = {
        'w1r_t': 0.1 * jax.random.normal(ks[0], (C, C), jnp.float32),
        'b1r':   0.1 * jax.random.normal(ks[1], (1, C), jnp.float32),
        'w1d_t': 0.1 * jax.random.normal(ks[2], (C, C), jnp.float32),
        'b1d':   0.1 * jax.random.normal(ks[3], (1, C), jnp.float32),
    }
    names = ['w2r', 'w3r', 'w4r', 'w5r', 'w6r',
             'w2d', 'w3d', 'w4d', 'w5d', 'w6d', 'w7r']
    for i, name in enumerate(names):
        p[name] = 0.1 * jax.random.normal(ks[4 + i], (3, 3, C, C), jnp.float32)
    # Note: conv7_d exists in the PyTorch __init__ but is never used in forward.
    return p


# ----------------------------------------------------------------------------
if __name__ == "__main__":
    N, C, H, W = 2, 32, 16, 16  # features = 32
    key = jax.random.PRNGKey(0)
    k_x, k_d, k_p = jax.random.split(key, 3)
    x_rgb = jax.random.normal(k_x, (N, C, H, W), jnp.float32)
    x_d = jax.random.normal(k_d, (N, C, H, W), jnp.float32)
    params = init_params(k_p, C)

    # In-kernel matmuls stay f32-operand / f32-accumulate (default MXU
    # precision); tolerance kept at 2e-2 (typical error is far smaller).
    TOL = 2e-2

    # Branch 1: fused RGB + depth path (sum(x_d) != 0)
    out_fused = mmf_forward(x_rgb, x_d, params)
    jax.block_until_ready(out_fused)
    ref_fused = _ref_forward(x_rgb, x_d, params)
    err = float(jnp.max(jnp.abs(out_fused - ref_fused)) /
                (jnp.max(jnp.abs(ref_fused)) + 1e-6))
    assert err < TOL, f"fused branch mismatch: rel_err={err}"

    # Branch 2: RGB-only path (sum(x_d) == 0)
    x_d_zero = jnp.zeros_like(x_d)
    out_rgb = mmf_forward(x_rgb, x_d_zero, params)
    jax.block_until_ready(out_rgb)
    ref_rgb = _ref_forward(x_rgb, x_d_zero, params)
    err2 = float(jnp.max(jnp.abs(out_rgb - ref_rgb)) /
                 (jnp.max(jnp.abs(ref_rgb)) + 1e-6))
    assert err2 < TOL, f"rgb-only branch mismatch: rel_err={err2}"

    print("KERNEL_OK")
</pallas_src>

<mosaic_0001>
module attributes {stable_mosaic.version = 11 : i64} {
  func.func @k(%arg0: memref<8x256xf32, #tpu.memory_space<vmem>>, %arg1: memref<8x256xf32, #tpu.memory_space<vmem>>) attributes {dimension_semantics = [], scalar_prefetch = 0 : i64, scratch_operands = 0 : i64, tpu.core_type = #tpu.core_type<tc>} {
    %c0 = arith.constant 0 : index
    %c0_0 = arith.constant 0 : index
    %0 = vector.load %arg0[%c0, %c0_0] : memref<8x256xf32, #tpu.memory_space<vmem>>, vector<8x256xf32>
    %c3_i32 = arith.constant 3 : i32
    %1 = tpu.dynamic_rotate %0 by %c3_i32 dim 1 : vector<8x256xf32>, i32 -> vector<8x256xf32>
    %c0_1 = arith.constant 0 : index
    %c0_2 = arith.constant 0 : index
    %2 = vector.load %arg1[%c0_1, %c0_2] : memref<8x256xf32, #tpu.memory_space<vmem>>, vector<8x256xf32>
    tpu.vector_store %arg1[%c0_1, %c0_2], %1 {strides = array<i32>} : memref<8x256xf32, #tpu.memory_space<vmem>>, vector<8x256xf32>,
    return
  }
}

</mosaic_0001>

<llo_original>
// kernel: tpu_custom_call.1
$region0: #{tpu_custom_call.1}
  #allocation0 [shape = 'u32[]', space=smem, size = 0x4, offset = 0x4, fixed_abs, tag = 'smem constant byte address 0x4 - core index']
  #allocation1 [shape = 'u32[144,128]{1,0:T(1,128)}', space=vmem, size = 0x12000, scoped, tag = 'internal scratch']
  %s0 = inlined_call_operand.hbm [shape: f32[8,256], index: 0, kind: input, shape index: {}]
  %s1 = inlined_call_operand.hbm [shape: f32[8,256], index: 1, kind: output, shape index: {}]
  %s2 = sld [smem:[#allocation0]]
  $region18: #{tpu_custom_call.1} parent=0
    _
  %s4 = ssub.s32 1, %s2
  %s5 = scalar_select 0, %s4, %s2
  $region1: #{tpu_custom_call.1} parent=0
    #allocation2 [shape = 'u8[8192]{0}', space=vmem, size = 0x2000, scoped, tag = 'input window, operand 0, single buffered']
    #allocation3 [shape = 's32[1]{0}', space=sflag, size = 0x4, scoped, tag = 'scoped memory for tpu_custom_call.1']
    #allocation4 [shape = 's32[1]{0}', space=sflag, size = 0x4, scoped, tag = 'scoped memory for tpu_custom_call.1']
    #allocation5 [shape = 'u8[8192]{0}', space=vmem, size = 0x2000, scoped, tag = 'output window, operand 0, single buffered']
    %6 = vsyncpa [#allocation3], 0
    %7 = vsyncpa [#allocation4], 0
    // Predicated region
    $region2: #{tpu_custom_call.1} parent=1 // pred_check
      _
    $region3: #{tpu_custom_call.1} parent=1 // pred_check_branch
      %9 = sbr.rel (0) target = $region5
    $region4: #{tpu_custom_call.1} parent=1 // pred_region
      %s11 = ssub.s32 256, 256
      %12 = vsyncadd [#allocation3], %s11
      %s14 = sshll.u32 [#allocation2], 4
      %s15 = int_to_ptr.vmem [resolvable:$true] %s14
      %17 = dma.hbm_to_vmem [thread:$0]  %s0, 256, %s15, [#allocation3]
    $region5: #{tpu_custom_call.1} parent=1 // pred_fallthru
      _
    // Predicated region
    $region6: #{tpu_custom_call.1} parent=1 // pred_check
      _
    $region7: #{tpu_custom_call.1} parent=1 // pred_check_branch
      %19 = sbr.rel (0) target = $region9
    $region8: #{tpu_custom_call.1} parent=1 // pred_region
      %20 = dma.done [#allocation3], 256
    $region9: #{tpu_custom_call.1} parent=1 // pred_fallthru
      _
    %v21 = vld [vmem:[#allocation2] sm:$0xff]
    %v22 = vld [vmem:[#allocation2 + $0x8] sm:$0xff]
    %23 = vrot.lane.b32.xlu0 %v21, 3
    %v24 = vpop.permute.xlu0 %23
    %25 = vrot.lane.b32.xlu0 %v22, 3
    %v26 = vpop.permute.xlu0 %25
    %v27 = vlaneseq
    %v28 = vand.u32 %v27, 127
    %vm29 = vcmp.lt.s32.totalorder %v28, 3
    %v30 = vsel %vm29, %v24, %v26
    %v31 = vsel %vm29, %v26, %v24
    %32 = vst [vmem:[#allocation5] sm:$0xff] %v31
    %33 = vst [vmem:[#allocation5 + $0x8] sm:$0xff] %v30
    // Predicated region
    $region10: #{tpu_custom_call.1} parent=1 // pred_check
      _
    $region11: #{tpu_custom_call.1} parent=1 // pred_check_branch
      %35 = sbr.rel (0) target = $region13
    $region12: #{tpu_custom_call.1} parent=1 // pred_region
      %s37 = ssub.s32 256, 256
      %38 = vsyncadd [#allocation4], %s37
      %s40 = sshll.u32 [#allocation5], 4
      %s41 = int_to_ptr.vmem [resolvable:$true] %s40
      %43 = dma.vmem_to_hbm [thread:$0]  %s41, 256, %s1, [#allocation4]
    $region13: #{tpu_custom_call.1} parent=1 // pred_fallthru
      _
    // Predicated region
    $region14: #{tpu_custom_call.1} parent=1 // pred_check
      _
    $region15: #{tpu_custom_call.1} parent=1 // pred_check_branch
      %45 = sbr.rel (0) target = $region17
    $region16: #{tpu_custom_call.1} parent=1 // pred_region
      %46 = dma.done [#allocation4], 256
    $region17: #{tpu_custom_call.1} parent=1 // pred_fallthru
      _
    %47 = vsyncpa [#allocation3], 1
    %48 = vsyncpa [#allocation4], 1

</llo_original>
